<compile_context>
chip_gen: v5e
topology: v5e:2x2
jax: 0.10.0
libtpu: 0.0.40
codegen_flags: <defaults>
</compile_context>

<pallas_src>
import functools

import jax
import jax.numpy as jnp
import numpy as np
from jax.experimental import pallas as pl
from jax.experimental.pallas import tpu as pltpu


def _focal_loss_kernel(x_ref, t_ref, w_ref, loss_ref, wsum_ref, *,
                       gamma, n_valid, tile_n):
    """One row-tile of the focal-loss reduction.

    x_ref:    (TN, C)  logits tile (native dtype, cast to f32 in-register)
    t_ref:    (TN, 1)  i32 target class per row
    w_ref:    (1, C)   f32 per-class weight (ones if weight=None)
    loss_ref: (1, 1)   f32 resident accumulator: sum(-w_t * picked)
    wsum_ref: (1, 1)   f32 resident accumulator: sum(w_t)
    """
    i = pl.program_id(0)

    @pl.when(i == 0)
    def _():
        loss_ref[...] = jnp.zeros((1, 1), jnp.float32)
        wsum_ref[...] = jnp.zeros((1, 1), jnp.float32)

    # Valid-row mask for the ragged last block (no wrapper-side padding).
    rows = i * tile_n + jax.lax.broadcasted_iota(jnp.int32, (tile_n, 1), 0)
    valid = rows < n_valid

    # Mask unspecified ragged rows to 0 BEFORE any math so no Inf/NaN can
    # survive the later 0-weight multiply.
    x = jnp.where(valid, x_ref[...].astype(jnp.float32), 0.0)   # (TN, C)
    t = t_ref[...]                                               # (TN, 1) i32
    w = w_ref[...]                                               # (1, C)  f32

    # Numerically stable log-sum-exp over the class (lane) dim — the only
    # full-tile EUP exp in the kernel.
    m = jnp.max(x, axis=-1, keepdims=True)
    lse = m + jnp.log(jnp.sum(jnp.exp(x - m), axis=-1, keepdims=True))

    # Gather the picked-class logit and weight via iota/compare one-hot
    # (no dynamic gather on TPU).
    classes = jax.lax.broadcasted_iota(jnp.int32, x.shape, 1)    # (TN, C)
    onehot = classes == t                                        # (TN, C)
    x_t = jnp.sum(jnp.where(onehot, x, 0.0), axis=-1, keepdims=True)   # (TN,1)
    w_t = jnp.sum(jnp.where(onehot, w, 0.0), axis=-1, keepdims=True)   # (TN,1)
    w_t = jnp.where(valid, w_t, 0.0)

    # Focal term only on the picked class: (1 - p_t)**gamma * log p_t.
    log_p_t = x_t - lse                       # (TN, 1)
    p_t = jnp.exp(log_p_t)                    # narrow column exp only
    q = jnp.maximum(1.0 - p_t, 0.0)           # clamp: p_t can round above 1
    g = float(gamma)
    if g == int(g) and 0 <= int(g) <= 8:
        # Integer gamma: repeated VPU multiply (avoids EUP pow = exp(g*log q)
        # and the q == 0 edge case).
        mod = jnp.ones_like(q)
        for _ in range(int(g)):
            mod = mod * q
    else:
        mod = q ** g                          # non-integer gamma: EUP pow
    picked = mod * log_p_t                    # (TN, 1)

    # One small XLU reduce per multi-MiB step, straight into the resident
    # (1, 1) output accumulators (no per-row VMEM scratch columns).
    loss_ref[...] += jnp.sum(-w_t * picked).reshape(1, 1)
    wsum_ref[...] += jnp.sum(w_t).reshape(1, 1)


def focal_loss(logits, targets, weight=None, gamma=2.0, reduction="mean",
               tile_rows=None):
    """Focal loss matching the PyTorch FocalLoss module forward pass.

    logits:  (N, C) float array (f32 or bf16; streamed in native dtype)
    targets: (N,)   int array of class indices
    weight:  optional (C,) per-class weight (None -> ones, as in nll_loss)
    tile_rows: optional cap on rows per tile (testing / tuning knob)
    """
    n, c = logits.shape
    itemsize = jnp.dtype(logits.dtype).itemsize
    c_pad = -(-c // 128) * 128
    # VMEM per row for ONE pipeline buffer: lane-padded logits row plus the
    # (tile_n, 1) int32 target column whose lane dim pads 1 -> 128 (512 B).
    vmem_per_row = c_pad * itemsize + 128 * 4
    rows_by_bytes = (4 << 20) // max(1, c * itemsize)   # ~4 MiB real logits
    rows_by_vmem = (10 << 20) // vmem_per_row            # x2 buffers <= ~20 MiB
    tile_n = min(rows_by_bytes, rows_by_vmem, 32768)
    if tile_rows is not None:
        tile_n = min(tile_n, int(tile_rows))
    if tile_n >= 256:
        tile_n = (tile_n // 256) * 256
    else:
        tile_n = max(8, (tile_n // 8) * 8)
    if tile_n >= n:
        tile_n = n            # single block; block dim == full dim is legal
    grid_n = pl.cdiv(n, tile_n)

    t = targets.astype(jnp.int32).reshape(n, 1)
    if weight is None:
        w = jnp.ones((1, c), jnp.float32)
    else:
        w = jnp.asarray(weight, jnp.float32).reshape(1, c)

    kernel = functools.partial(_focal_loss_kernel, gamma=float(gamma),
                               n_valid=n, tile_n=tile_n)

    loss_sum, w_sum = pl.pallas_call(
        kernel,
        out_shape=(
            jax.ShapeDtypeStruct((1, 1), jnp.float32),
            jax.ShapeDtypeStruct((1, 1), jnp.float32),
        ),
        grid_spec=pltpu.PrefetchScalarGridSpec(
            num_scalar_prefetch=0,
            grid=(grid_n,),
            in_specs=[
                pl.BlockSpec((tile_n, c), lambda i: (i, 0)),
                pl.BlockSpec((tile_n, 1), lambda i: (i, 0)),
                pl.BlockSpec((1, c), lambda i: (0, 0)),
            ],
            out_specs=[
                pl.BlockSpec((1, 1), lambda i: (0, 0)),
                pl.BlockSpec((1, 1), lambda i: (0, 0)),
            ]),
        compiler_params=pltpu.CompilerParams(
            dimension_semantics=("arbitrary",),
            vmem_limit_bytes=32 << 20),
    )(logits, t, w)

    loss = loss_sum[0, 0]
    if reduction == "mean":
        # nll_loss 'mean' divides by the sum of the picked per-class weights
        # (equals N when weight is None). NaN if all rows masked, as in torch.
        return loss / w_sum[0, 0]
    elif reduction == "sum":
        return loss
    else:
        # TODO(synk): reduction='none' needs a per-row (N,) output spec.
        raise NotImplementedError("only 'mean' and 'sum' reductions supported")


def _focal_loss_ref(logits, targets, weight=None, gamma=2.0):
    """Pure-JAX reference mirroring the PyTorch module (mean reduction)."""
    log_prob = jax.nn.log_softmax(logits.astype(jnp.float32), axis=-1)
    prob = jnp.exp(log_prob)
    focal = (1.0 - prob) ** gamma * log_prob
    n, _ = logits.shape
    picked = focal[jnp.arange(n), targets]
    if weight is None:
        w_t = jnp.ones((n,), jnp.float32)
    else:
        w_t = jnp.asarray(weight, jnp.float32)[targets]
    return jnp.sum(-w_t * picked) / jnp.sum(w_t)


if __name__ == "__main__":
    key = jax.random.PRNGKey(0)
    k1, k2, k3, k4, k5, k6 = jax.random.split(key, 6)

    # Test 1: module defaults (f32 logits, no class weight, gamma=2, mean).
    N, C = 128, 16
    logits = jax.random.normal(k1, (N, C), dtype=jnp.float32)
    targets = jax.random.randint(k2, (N,), 0, C, dtype=jnp.int32)
    out = focal_loss(logits, targets, weight=None, gamma=2.0, reduction="mean")
    out = jax.block_until_ready(out)
    ref = _focal_loss_ref(logits, targets, None, 2.0)
    np.testing.assert_allclose(np.asarray(out), np.asarray(ref),
                               rtol=1e-5, atol=1e-6)

    # Test 2: ragged N (not multiple of 8), bf16 logits, per-class weights.
    N2, C2 = 100, 10
    logits2 = jax.random.normal(k3, (N2, C2)).astype(jnp.bfloat16)
    targets2 = jax.random.randint(k4, (N2,), 0, C2, dtype=jnp.int32)
    weight2 = jnp.linspace(0.5, 1.5, C2, dtype=jnp.float32)
    out2 = focal_loss(logits2, targets2, weight=weight2, gamma=2.0,
                      reduction="mean")
    out2 = jax.block_until_ready(out2)
    ref2 = _focal_loss_ref(logits2, targets2, weight2, 2.0)
    np.testing.assert_allclose(np.asarray(out2), np.asarray(ref2),
                               rtol=1e-4, atol=1e-5)

    # Test 3: multi-step grid with a ragged last block (forced small tile),
    # exercising the unpadded ragged path and resident-output accumulation.
    N3, C3 = 1000, 16
    logits3 = jax.random.normal(k5, (N3, C3), dtype=jnp.float32)
    targets3 = jax.random.randint(k6, (N3,), 0, C3, dtype=jnp.int32)
    out3 = focal_loss(logits3, targets3, gamma=2.0, reduction="mean",
                      tile_rows=256)
    out3 = jax.block_until_ready(out3)
    ref3 = _focal_loss_ref(logits3, targets3, None, 2.0)
    np.testing.assert_allclose(np.asarray(out3), np.asarray(ref3),
                               rtol=1e-5, atol=1e-5)

    print("KERNEL_OK")
</pallas_src>

<mosaic_0001>
module attributes {stable_mosaic.version = 11 : i64} {
  func.func @_focal_loss_kernel(%arg0: i32, %arg1: memref<128x16xf32, #tpu.memory_space<vmem>>, %arg2: memref<128x1xi32, #tpu.memory_space<vmem>>, %arg3: memref<1x16xf32, #tpu.memory_space<vmem>>, %arg4: memref<1x1xf32, #tpu.memory_space<vmem>>, %arg5: memref<1x1xf32, #tpu.memory_space<vmem>>) attributes {dimension_semantics = [#tpu.dimension_semantics<arbitrary>], iteration_bounds = array<i64: 1>, scalar_prefetch = 0 : i64, scratch_operands = 0 : i64, tpu.core_type = #tpu.core_type<tc>, window_params = [{transform_indices = @transform_0, window_bounds = array<i64: 128, 16>}, {transform_indices = @transform_1, window_bounds = array<i64: 128, 1>}, {pipeline_mode = #tpu.pipeline_mode<synchronous>, transform_indices = @transform_2, window_bounds = array<i64: 1, 16>}, {pipeline_mode = #tpu.pipeline_mode<synchronous>, transform_indices = @transform_3, window_bounds = array<i64: 1, 1>}, {pipeline_mode = #tpu.pipeline_mode<synchronous>, transform_indices = @transform_4, window_bounds = array<i64: 1, 1>}]} {
    %c0_i32 = arith.constant 0 : i32
    %0 = arith.cmpi eq, %arg0, %c0_i32 : i32
    %1 = arith.extui %0 : i1 to i32
    %c0_i32_0 = arith.constant 0 : i32
    %2 = arith.cmpi ne, %1, %c0_i32_0 : i32
    scf.if %2 {
      %cst_28 = arith.constant 0.000000e+00 : f32
      %69 = vector.broadcast %cst_28 : f32 to vector<1x1xf32>
      %c0_29 = arith.constant 0 : index
      %c0_30 = arith.constant 0 : index
      %70 = vector.load %arg4[%c0_29, %c0_30] : memref<1x1xf32, #tpu.memory_space<vmem>>, vector<1x1xf32>
      tpu.vector_store %arg4[%c0_29, %c0_30], %69 {strides = array<i32>} : memref<1x1xf32, #tpu.memory_space<vmem>>, vector<1x1xf32>,
      %cst_31 = arith.constant 0.000000e+00 : f32
      %71 = vector.broadcast %cst_31 : f32 to vector<1x1xf32>
      %c0_32 = arith.constant 0 : index
      %c0_33 = arith.constant 0 : index
      %72 = vector.load %arg5[%c0_32, %c0_33] : memref<1x1xf32, #tpu.memory_space<vmem>>, vector<1x1xf32>
      tpu.vector_store %arg5[%c0_32, %c0_33], %71 {strides = array<i32>} : memref<1x1xf32, #tpu.memory_space<vmem>>, vector<1x1xf32>,
    } else {
    }
    %c128_i32 = arith.constant 128 : i32
    %3 = arith.muli %arg0, %c128_i32 : i32
    %4 = tpu.iota {dimensions = array<i32: 0>} : vector<128x1xi32>
    %5 = vector.broadcast %3 : i32 to vector<128x1xi32>
    %6 = arith.addi %5, %4 : vector<128x1xi32>
    %c128_i32_1 = arith.constant 128 : i32
    %7 = vector.broadcast %c128_i32_1 : i32 to vector<128x1xi32>
    %8 = arith.cmpi slt, %6, %7 : vector<128x1xi32>
    %c0 = arith.constant 0 : index
    %c0_2 = arith.constant 0 : index
    %9 = vector.load %arg1[%c0, %c0_2] : memref<128x16xf32, #tpu.memory_space<vmem>>, vector<128x16xf32>
    %cst = arith.constant 0.000000e+00 : f32
    %10 = vector.shape_cast %8 : vector<128x1xi1> to vector<128x1xi1>
    %11 = vector.broadcast %10 : vector<128x1xi1> to vector<128x16xi1>
    %12 = vector.broadcast %cst : f32 to vector<128x16xf32>
    %13 = arith.select %11, %9, %12 : vector<128x16xi1>, vector<128x16xf32>
    %c0_3 = arith.constant 0 : index
    %c0_4 = arith.constant 0 : index
    %14 = vector.load %arg2[%c0_3, %c0_4] : memref<128x1xi32, #tpu.memory_space<vmem>>, vector<128x1xi32>
    %c0_5 = arith.constant 0 : index
    %c0_6 = arith.constant 0 : index
    %15 = vector.load %arg3[%c0_5, %c0_6] : memref<1x16xf32, #tpu.memory_space<vmem>>, vector<1x16xf32>
    %cst_7 = arith.constant dense<0xFF800000> : vector<128xf32>
    %16 = vector.multi_reduction <maximumf>, %13, %cst_7 [1] : vector<128x16xf32> to vector<128xf32>
    %17 = vector.shape_cast %16 : vector<128xf32> to vector<128x1xf32>
    %18 = vector.broadcast %17 : vector<128x1xf32> to vector<128x16xf32>
    %19 = arith.subf %13, %18 : vector<128x16xf32>
    %20 = math.exp %19 : vector<128x16xf32>
    %cst_8 = arith.constant dense<0.000000e+00> : vector<128xf32>
    %21 = vector.multi_reduction <add>, %20, %cst_8 [1] : vector<128x16xf32> to vector<128xf32>
    %22 = vector.shape_cast %21 : vector<128xf32> to vector<128x1xf32>
    %23 = math.log %22 : vector<128x1xf32>
    %24 = arith.addf %17, %23 : vector<128x1xf32>
    %25 = tpu.iota {dimensions = array<i32: 1>} : vector<128x16xi32>
    %26 = vector.broadcast %14 : vector<128x1xi32> to vector<128x16xi32>
    %27 = arith.cmpi eq, %25, %26 : vector<128x16xi32>
    %cst_9 = arith.constant 0.000000e+00 : f32
    %28 = vector.broadcast %cst_9 : f32 to vector<128x16xf32>
    %29 = arith.select %27, %13, %28 : vector<128x16xi1>, vector<128x16xf32>
    %cst_10 = arith.constant dense<0.000000e+00> : vector<128xf32>
    %30 = vector.multi_reduction <add>, %29, %cst_10 [1] : vector<128x16xf32> to vector<128xf32>
    %31 = vector.shape_cast %30 : vector<128xf32> to vector<128x1xf32>
    %cst_11 = arith.constant 0.000000e+00 : f32
    %32 = vector.shape_cast %15 : vector<1x16xf32> to vector<1x16xf32>
    %33 = vector.broadcast %32 : vector<1x16xf32> to vector<128x16xf32>
    %34 = vector.broadcast %cst_11 : f32 to vector<128x16xf32>
    %35 = arith.select %27, %33, %34 : vector<128x16xi1>, vector<128x16xf32>
    %cst_12 = arith.constant dense<0.000000e+00> : vector<128xf32>
    %36 = vector.multi_reduction <add>, %35, %cst_12 [1] : vector<128x16xf32> to vector<128xf32>
    %37 = vector.shape_cast %36 : vector<128xf32> to vector<128x1xf32>
    %cst_13 = arith.constant 0.000000e+00 : f32
    %38 = vector.broadcast %cst_13 : f32 to vector<128x1xf32>
    %39 = arith.select %8, %37, %38 : vector<128x1xi1>, vector<128x1xf32>
    %40 = arith.subf %31, %24 : vector<128x1xf32>
    %41 = math.exp %40 : vector<128x1xf32>
    %cst_14 = arith.constant 1.000000e+00 : f32
    %42 = vector.broadcast %cst_14 : f32 to vector<128x1xf32>
    %43 = arith.subf %42, %41 : vector<128x1xf32>
    %cst_15 = arith.constant 0.000000e+00 : f32
    %44 = vector.broadcast %cst_15 : f32 to vector<128x1xf32>
    %45 = arith.maximumf %43, %44 : vector<128x1xf32>
    %cst_16 = arith.constant 1.000000e+00 : f32
    %46 = vector.broadcast %cst_16 : f32 to vector<128x1xf32>
    %47 = arith.mulf %46, %45 : vector<128x1xf32>
    %48 = arith.mulf %47, %45 : vector<128x1xf32>
    %49 = arith.mulf %48, %40 : vector<128x1xf32>
    %c0_17 = arith.constant 0 : index
    %c0_18 = arith.constant 0 : index
    %50 = vector.load %arg4[%c0_17, %c0_18] : memref<1x1xf32, #tpu.memory_space<vmem>>, vector<1x1xf32>
    %cst_19 = arith.constant 0.000000e+00 : f32
    %51 = vector.broadcast %cst_19 : f32 to vector<128x1xf32>
    %52 = arith.subf %51, %39 : vector<128x1xf32>
    %53 = arith.mulf %52, %49 : vector<128x1xf32>
    %54 = vector.shape_cast %53 : vector<128x1xf32> to vector<1x128x1xf32>
    %cst_20 = arith.constant dense<0.000000e+00> : vector<1xf32>
    %55 = vector.multi_reduction <add>, %54, %cst_20 [1, 2] : vector<1x128x1xf32> to vector<1xf32>
    %56 = vector.shape_cast %55 : vector<1xf32> to vector<1x1x1xf32>
    %57 = vector.extract %56[0, 0, 0] : f32 from vector<1x1x1xf32>
    %58 = vector.broadcast %57 : f32 to vector<1x1xf32>
    %59 = arith.addf %50, %58 : vector<1x1xf32>
    %c0_21 = arith.constant 0 : index
    %c0_22 = arith.constant 0 : index
    %60 = vector.load %arg4[%c0_21, %c0_22] : memref<1x1xf32, #tpu.memory_space<vmem>>, vector<1x1xf32>
    tpu.vector_store %arg4[%c0_21, %c0_22], %59 {strides = array<i32>} : memref<1x1xf32, #tpu.memory_space<vmem>>, vector<1x1xf32>,
    %c0_23 = arith.constant 0 : index
    %c0_24 = arith.constant 0 : index
    %61 = vector.load %arg5[%c0_23, %c0_24] : memref<1x1xf32, #tpu.memory_space<vmem>>, vector<1x1xf32>
    %62 = vector.shape_cast %39 : vector<128x1xf32> to vector<1x128x1xf32>
    %cst_25 = arith.constant dense<0.000000e+00> : vector<1xf32>
    %63 = vector.multi_reduction <add>, %62, %cst_25 [1, 2] : vector<1x128x1xf32> to vector<1xf32>
    %64 = vector.shape_cast %63 : vector<1xf32> to vector<1x1x1xf32>
    %65 = vector.extract %64[0, 0, 0] : f32 from vector<1x1x1xf32>
    %66 = vector.broadcast %65 : f32 to vector<1x1xf32>
    %67 = arith.addf %61, %66 : vector<1x1xf32>
    %c0_26 = arith.constant 0 : index
    %c0_27 = arith.constant 0 : index
    %68 = vector.load %arg5[%c0_26, %c0_27] : memref<1x1xf32, #tpu.memory_space<vmem>>, vector<1x1xf32>
    tpu.vector_store %arg5[%c0_26, %c0_27], %67 {strides = array<i32>} : memref<1x1xf32, #tpu.memory_space<vmem>>, vector<1x1xf32>,
    return
  }
  func.func @transform_0(%arg0: i32) -> (i32, i32) {
    %c0_i32 = arith.constant 0 : i32
    %c0_i32_0 = arith.constant 0 : i32
    return %arg0, %c0_i32 : i32, i32
  }
  func.func @transform_1(%arg0: i32) -> (i32, i32) {
    %c0_i32 = arith.constant 0 : i32
    %c0_i32_0 = arith.constant 0 : i32
    return %arg0, %c0_i32 : i32, i32
  }
  func.func @transform_2(%arg0: i32) -> (i32, i32) {
    %c0_i32 = arith.constant 0 : i32
    %c0_i32_0 = arith.constant 0 : i32
    %c0_i32_1 = arith.constant 0 : i32
    return %c0_i32, %c0_i32_0 : i32, i32
  }
  func.func @transform_3(%arg0: i32) -> (i32, i32) {
    %c0_i32 = arith.constant 0 : i32
    %c0_i32_0 = arith.constant 0 : i32
    %c0_i32_1 = arith.constant 0 : i32
    return %c0_i32, %c0_i32_0 : i32, i32
  }
  func.func @transform_4(%arg0: i32) -> (i32, i32) {
    %c0_i32 = arith.constant 0 : i32
    %c0_i32_0 = arith.constant 0 : i32
    %c0_i32_1 = arith.constant 0 : i32
    return %c0_i32, %c0_i32_0 : i32, i32
  }
}

</mosaic_0001>

<llo_original>
// kernel: tpu_custom_call.1
$region0: #{tpu_custom_call.1}
  #allocation0 [shape = 'u32[]', space=smem, size = 0x4, offset = 0x4, fixed_abs, tag = 'smem constant byte address 0x4 - core index']
  #allocation1 [shape = 'u32[72,128]{1,0:T(1,128)}', space=vmem, size = 0x9000, scoped, tag = 'internal scratch']
  %s0 = inlined_call_operand.vmem [shape: f32[128,16], index: 0, kind: input, shape index: {}]
  %s1 = inlined_call_operand.vmem [shape: s32[128,1], index: 1, kind: input, shape index: {}]
  %s2 = inlined_call_operand.vmem [shape: f32[1,16], index: 2, kind: input, shape index: {}]
  %s3 = inlined_call_operand.hbm [shape: f32[1,1], index: 3, kind: output, shape index: {0}]
  %s4 = inlined_call_operand.hbm [shape: f32[1,1], index: 4, kind: output, shape index: {1}]
  %5 = xla_tuple %s3, %s4
  %s6 = sld [smem:[#allocation0]]
  $region34: #{tpu_custom_call.1} parent=0
    _
  %s8 = ssub.s32 1, %s6
  %s9 = scalar_select 0, %s8, %s6
  $region1: #{tpu_custom_call.1} parent=0
    #allocation2 [shape = 'u8[512]{0}', space=vmem, size = 0x400, scoped, tag = 'output window, operand 0, single buffered']
    #allocation3 [shape = 's32[1]{0}', space=sflag, size = 0x4, scoped, tag = 'scoped memory for tpu_custom_call.1']
    #allocation4 [shape = 'u8[512]{0}', space=vmem, size = 0x400, scoped, tag = 'output window, operand 1, single buffered']
    #allocation5 [shape = 's32[1]{0}', space=sflag, size = 0x4, scoped, tag = 'scoped memory for tpu_custom_call.1']
    %10 = vsyncpa [#allocation3], 0
    %11 = vsyncpa [#allocation5], 0
    // Predicated region
    $region2: #{tpu_custom_call.1} parent=1 // pred_check
      _
    $region3: #{tpu_custom_call.1} parent=1 // pred_check_branch
      %13 = sbr.rel (0) target = $region5
    $region4: #{tpu_custom_call.1} parent=1 // pred_region
      _
    $region5: #{tpu_custom_call.1} parent=1 // pred_fallthru
      _
    // Predicated region
    $region6: #{tpu_custom_call.1} parent=1 // pred_check
      _
    $region7: #{tpu_custom_call.1} parent=1 // pred_check_branch
      %15 = sbr.rel (0) target = $region9
    $region8: #{tpu_custom_call.1} parent=1 // pred_region
      _
    $region9: #{tpu_custom_call.1} parent=1 // pred_fallthru
      _
    // Predicated region
    $region10: #{tpu_custom_call.1} parent=1 // pred_check
      _
    $region11: #{tpu_custom_call.1} parent=1 // pred_check_branch
      %17 = sbr.rel (0) target = $region13
    $region12: #{tpu_custom_call.1} parent=1 // pred_region
      _
    $region13: #{tpu_custom_call.1} parent=1 // pred_fallthru
      _
    %p18 = scmp.eq.s32.totalorder 0, 0
    // Predicated region
    $region14: #{tpu_custom_call.1} parent=1 // pred_check
      %p19 = pneg %p18
    $region15: #{tpu_custom_call.1} parent=1 // pred_check_branch
      %21 = sbr.rel (%p19) target = $region17
    $region16: #{tpu_custom_call.1} parent=1 // pred_region
      %vm22 = vcmask 0
      %23 = vst.msk [vmem:[#allocation2] sm:$0x1] %vm22, 0.0
      %24 = vst.msk [vmem:[#allocation4] sm:$0x1] %vm22, 0.0
    $region17: #{tpu_custom_call.1} parent=1 // pred_fallthru
      _
    %s25 = smul.u32 0, 128
    %v26 = vlaneseq
    %v27 = vshrl.u32 %v26, 7
    %v28 = vadd.s32 %v27, 8
    %v29 = vadd.s32 %v27, 16
    %v30 = vadd.s32 %v27, 24
    %v31 = vadd.s32 %v27, 32
    %v32 = vadd.s32 %v27, 40
    %v33 = vadd.s32 %v27, 48
    %v34 = vadd.s32 %v27, 56
    %v35 = vadd.s32 %v27, 64
    %v36 = vadd.s32 %v27, 72
    %v37 = vadd.s32 %v27, 80
    %v38 = vadd.s32 %v27, 88
    %v39 = vadd.s32 %v27, 96
    %v40 = vadd.s32 %v27, 104
    %v41 = vadd.s32 %v27, 112
    %v42 = vadd.s32 %v27, 120
    %v43 = vstv %s25
    %v44 = vadd.s32 %v43, %v27
    %v45 = vadd.s32 %v43, %v28
    %v46 = vadd.s32 %v43, %v29
    %v47 = vadd.s32 %v43, %v30
    %v48 = vadd.s32 %v43, %v31
    %v49 = vadd.s32 %v43, %v32
    %v50 = vadd.s32 %v43, %v33
    %v51 = vadd.s32 %v43, %v34
    %v52 = vadd.s32 %v43, %v35
    %v53 = vadd.s32 %v43, %v36
    %v54 = vadd.s32 %v43, %v37
    %v55 = vadd.s32 %v43, %v38
    %v56 = vadd.s32 %v43, %v39
    %v57 = vadd.s32 %v43, %v40
    %v58 = vadd.s32 %v43, %v41
    %v59 = vadd.s32 %v43, %v42
    %vm60 = vcmp.lt.s32.totalorder %v44, 128
    %vm61 = vcmp.lt.s32.totalorder %v45, 128
    %vm62 = vcmp.lt.s32.totalorder %v46, 128
    %vm63 = vcmp.lt.s32.totalorder %v47, 128
    %vm64 = vcmp.lt.s32.totalorder %v48, 128
    %vm65 = vcmp.lt.s32.totalorder %v49, 128
    %vm66 = vcmp.lt.s32.totalorder %v50, 128
    %vm67 = vcmp.lt.s32.totalorder %v51, 128
    %vm68 = vcmp.lt.s32.totalorder %v52, 128
    %vm69 = vcmp.lt.s32.totalorder %v53, 128
    %vm70 = vcmp.lt.s32.totalorder %v54, 128
    %vm71 = vcmp.lt.s32.totalorder %v55, 128
    %vm72 = vcmp.lt.s32.totalorder %v56, 128
    %vm73 = vcmp.lt.s32.totalorder %v57, 128
    %vm74 = vcmp.lt.s32.totalorder %v58, 128
    %vm75 = vcmp.lt.s32.totalorder %v59, 128
    %v76 = vld [vmem:[%s0] sm:$0xff]
    %v77 = vld [vmem:[%s0 + $0x8] sm:$0xff]
    %v78 = vld [vmem:[%s0 + $0x10] sm:$0xff]
    %v79 = vld [vmem:[%s0 + $0x18] sm:$0xff]
    %v80 = vld [vmem:[%s0 + $0x20] sm:$0xff]
    %v81 = vld [vmem:[%s0 + $0x28] sm:$0xff]
    %v82 = vld [vmem:[%s0 + $0x30] sm:$0xff]
    %v83 = vld [vmem:[%s0 + $0x38] sm:$0xff]
    %v84 = vld [vmem:[%s0 + $0x40] sm:$0xff]
    %v85 = vld [vmem:[%s0 + $0x48] sm:$0xff]
    %v86 = vld [vmem:[%s0 + $0x50] sm:$0xff]
    %v87 = vld [vmem:[%s0 + $0x58] sm:$0xff]
    %v88 = vld [vmem:[%s0 + $0x60] sm:$0xff]
    %v89 = vld [vmem:[%s0 + $0x68] sm:$0xff]
    %v90 = vld [vmem:[%s0 + $0x70] sm:$0xff]
    %v91 = vld [vmem:[%s0 + $0x78] sm:$0xff]
    %v92 = vsel %vm60, 1, 0
    %v93 = vsel %vm61, 1, 0
    %v94 = vsel %vm62, 1, 0
    %v95 = vsel %vm63, 1, 0
    %v96 = vsel %vm64, 1, 0
    %v97 = vsel %vm65, 1, 0
    %v98 = vsel %vm66, 1, 0
    %v99 = vsel %vm67, 1, 0
    %v100 = vsel %vm68, 1, 0
    %v101 = vsel %vm69, 1, 0
    %v102 = vsel %vm70, 1, 0
    %v103 = vsel %vm71, 1, 0
    %v104 = vsel %vm72, 1, 0
    %v105 = vsel %vm73, 1, 0
    %v106 = vsel %vm74, 1, 0
    %v107 = vsel %vm75, 1, 0
    %vm108 = vcmp.eq.s32.totalorder %v92, 1
    %vm109 = vcmp.eq.s32.totalorder %v93, 1
    %vm110 = vcmp.eq.s32.totalorder %v94, 1
    %vm111 = vcmp.eq.s32.totalorder %v95, 1
    %vm112 = vcmp.eq.s32.totalorder %v96, 1
    %vm113 = vcmp.eq.s32.totalorder %v97, 1
    %vm114 = vcmp.eq.s32.totalorder %v98, 1
    %vm115 = vcmp.eq.s32.totalorder %v99, 1
    %vm116 = vcmp.eq.s32.totalorder %v100, 1
    %vm117 = vcmp.eq.s32.totalorder %v101, 1
    %vm118 = vcmp.eq.s32.totalorder %v102, 1
    %vm119 = vcmp.eq.s32.totalorder %v103, 1
    %vm120 = vcmp.eq.s32.totalorder %v104, 1
    %vm121 = vcmp.eq.s32.totalorder %v105, 1
    %vm122 = vcmp.eq.s32.totalorder %v106, 1
    %vm123 = vcmp.eq.s32.totalorder %v107, 1
    %v124 = vsel %vm108, %v76, 0.0
    %v125 = vsel %vm109, %v77, 0.0
    %v126 = vsel %vm110, %v78, 0.0
    %v127 = vsel %vm111, %v79, 0.0
    %v128 = vsel %vm112, %v80, 0.0
    %v129 = vsel %vm113, %v81, 0.0
    %v130 = vsel %vm114, %v82, 0.0
    %v131 = vsel %vm115, %v83, 0.0
    %v132 = vsel %vm116, %v84, 0.0
    %v133 = vsel %vm117, %v85, 0.0
    %v134 = vsel %vm118, %v86, 0.0
    %v135 = vsel %vm119, %v87, 0.0
    %v136 = vsel %vm120, %v88, 0.0
    %v137 = vsel %vm121, %v89, 0.0
    %v138 = vsel %vm122, %v90, 0.0
    %v139 = vsel %vm123, %v91, 0.0
    %v140 = vld [vmem:[%s1] sm:$0xff]
    %v141 = vld [vmem:[%s1 + $0x8] sm:$0xff]
    %v142 = vld [vmem:[%s1 + $0x10] sm:$0xff]
    %v143 = vld [vmem:[%s1 + $0x18] sm:$0xff]
    %v144 = vld [vmem:[%s1 + $0x20] sm:$0xff]
    %v145 = vld [vmem:[%s1 + $0x28] sm:$0xff]
    %v146 = vld [vmem:[%s1 + $0x30] sm:$0xff]
    %v147 = vld [vmem:[%s1 + $0x38] sm:$0xff]
    %v148 = vld [vmem:[%s1 + $0x40] sm:$0xff]
    %v149 = vld [vmem:[%s1 + $0x48] sm:$0xff]
    %v150 = vld [vmem:[%s1 + $0x50] sm:$0xff]
    %v151 = vld [vmem:[%s1 + $0x58] sm:$0xff]
    %v152 = vld [vmem:[%s1 + $0x60] sm:$0xff]
    %v153 = vld [vmem:[%s1 + $0x68] sm:$0xff]
    %v154 = vld [vmem:[%s1 + $0x70] sm:$0xff]
    %v155 = vld [vmem:[%s1 + $0x78] sm:$0xff]
    %v156 = vld [vmem:[%s2] sm:$0x1]
    %vm157 = vcmask 130048
    %v158 = vsel %vm157, %v124, -inf
    %159 = vmax.xlane.f32.xlu0 %v158
    %v160 = vpop.xlane.xlu0 %159
    %v161 = vsel %vm157, %v125, -inf
    %162 = vmax.xlane.f32.xlu0 %v161
    %v163 = vpop.xlane.xlu0 %162
    %v164 = vsel %vm157, %v126, -inf
    %165 = vmax.xlane.f32.xlu0 %v164
    %v166 = vpop.xlane.xlu0 %165
    %v167 = vsel %vm157, %v127, -inf
    %168 = vmax.xlane.f32.xlu0 %v167
    %v169 = vpop.xlane.xlu0 %168
    %v170 = vsel %vm157, %v128, -inf
    %171 = vmax.xlane.f32.xlu0 %v170
    %v172 = vpop.xlane.xlu0 %171
    %v173 = vsel %vm157, %v129, -inf
    %174 = vmax.xlane.f32.xlu0 %v173
    %v175 = vpop.xlane.xlu0 %174
    %v176 = vsel %vm157, %v130, -inf
    %177 = vmax.xlane.f32.xlu0 %v176
    %v178 = vpop.xlane.xlu0 %177
    %v179 = vsel %vm157, %v131, -inf
    %180 = vmax.xlane.f32.xlu0 %v179
    %v181 = vpop.xlane.xlu0 %180
    %v182 = vsel %vm157, %v132, -inf
    %183 = vmax.xlane.f32.xlu0 %v182
    %v184 = vpop.xlane.xlu0 %183
    %v185 = vsel %vm157, %v133, -inf
    %186 = vmax.xlane.f32.xlu0 %v185
    %v187 = vpop.xlane.xlu0 %186
    %v188 = vsel %vm157, %v134, -inf
    %189 = vmax.xlane.f32.xlu0 %v188
    %v190 = vpop.xlane.xlu0 %189
    %v191 = vsel %vm157, %v135, -inf
    %192 = vmax.xlane.f32.xlu0 %v191
    %v193 = vpop.xlane.xlu0 %192
    %v194 = vsel %vm157, %v136, -inf
    %195 = vmax.xlane.f32.xlu0 %v194
    %v196 = vpop.xlane.xlu0 %195
    %v197 = vsel %vm157, %v137, -inf
    %198 = vmax.xlane.f32.xlu0 %v197
    %v199 = vpop.xlane.xlu0 %198
    %v200 = vsel %vm157, %v138, -inf
    %201 = vmax.xlane.f32.xlu0 %v200
    %v202 = vpop.xlane.xlu0 %201
    %v203 = vsel %vm157, %v139, -inf
    %204 = vmax.xlane.f32.xlu0 %v203
    %v205 = vpop.xlane.xlu0 %204
    %v206 = vsub.f32 %v124, %v160
    %v207 = vsub.f32 %v125, %v163
    %v208 = vsub.f32 %v126, %v166
    %v209 = vsub.f32 %v127, %v169
    %v210 = vsub.f32 %v128, %v172
    %v211 = vsub.f32 %v129, %v175
    %v212 = vsub.f32 %v130, %v178
    %v213 = vsub.f32 %v131, %v181
    %v214 = vsub.f32 %v132, %v184
    %v215 = vsub.f32 %v133, %v187
    %v216 = vsub.f32 %v134, %v190
    %v217 = vsub.f32 %v135, %v193
    %v218 = vsub.f32 %v136, %v196
    %v219 = vsub.f32 %v137, %v199
    %v220 = vsub.f32 %v138, %v202
    %v221 = vsub.f32 %v139, %v205
    %v222 = vmul.f32 %v206, 1.442695
    %v223 = vpow.pop %v222
    %v224 = vmul.f32 %v207, 1.442695
    %v225 = vpow.pop %v224
    %v226 = vmul.f32 %v208, 1.442695
    %v227 = vpow.pop %v226
    %v228 = vmul.f32 %v209, 1.442695
    %v229 = vpow.pop %v228
    %v230 = vmul.f32 %v210, 1.442695
    %v231 = vpow.pop %v230
    %v232 = vmul.f32 %v211, 1.442695
    %v233 = vpow.pop %v232
    %v234 = vmul.f32 %v212, 1.442695
    %v235 = vpow.pop %v234
    %v236 = vmul.f32 %v213, 1.442695
    %v237 = vpow.pop %v236
    %v238 = vmul.f32 %v214, 1.442695
    %v239 = vpow.pop %v238
    %v240 = vmul.f32 %v215, 1.442695
    %v241 = vpow.pop %v240
    %v242 = vmul.f32 %v216, 1.442695
    %v243 = vpow.pop %v242
    %v244 = vmul.f32 %v217, 1.442695
    %v245 = vpow.pop %v244
    %v246 = vmul.f32 %v218, 1.442695
    %v247 = vpow.pop %v246
    %v248 = vmul.f32 %v219, 1.442695
    %v249 = vpow.pop %v248
    %v250 = vmul.f32 %v220, 1.442695
    %v251 = vpow.pop %v250
    %v252 = vmul.f32 %v221, 1.442695
    %v253 = vpow.pop %v252
    %v254 = vsel %vm157, %v223, 0.0
    %255 = vadd.xlane.f32.xlu0 %v254
    %v256 = vpop.xlane.xlu0 %255
    %v257 = vsel %vm157, %v225, 0.0
    %258 = vadd.xlane.f32.xlu0 %v257
    %v259 = vpop.xlane.xlu0 %258
    %v260 = vsel %vm157, %v227, 0.0
    %261 = vadd.xlane.f32.xlu0 %v260
    %v262 = vpop.xlane.xlu0 %261
    %v263 = vsel %vm157, %v229, 0.0
    %264 = vadd.xlane.f32.xlu0 %v263
    %v265 = vpop.xlane.xlu0 %264
    %v266 = vsel %vm157, %v231, 0.0
    %267 = vadd.xlane.f32.xlu0 %v266
    %v268 = vpop.xlane.xlu0 %267
    %v269 = vsel %vm157, %v233, 0.0
    %270 = vadd.xlane.f32.xlu0 %v269
    %v271 = vpop.xlane.xlu0 %270
    %v272 = vsel %vm157, %v235, 0.0
    %273 = vadd.xlane.f32.xlu0 %v272
    %v274 = vpop.xlane.xlu0 %273
    %v275 = vsel %vm157, %v237, 0.0
    %276 = vadd.xlane.f32.xlu0 %v275
    %v277 = vpop.xlane.xlu0 %276
    %v278 = vsel %vm157, %v239, 0.0
    %279 = vadd.xlane.f32.xlu0 %v278
    %v280 = vpop.xlane.xlu0 %279
    %v281 = vsel %vm157, %v241, 0.0
    %282 = vadd.xlane.f32.xlu0 %v281
    %v283 = vpop.xlane.xlu0 %282
    %v284 = vsel %vm157, %v243, 0.0
    %285 = vadd.xlane.f32.xlu0 %v284
    %v286 = vpop.xlane.xlu0 %285
    %v287 = vsel %vm157, %v245, 0.0
    %288 = vadd.xlane.f32.xlu0 %v287
    %v289 = vpop.xlane.xlu0 %288
    %v290 = vsel %vm157, %v247, 0.0
    %291 = vadd.xlane.f32.xlu0 %v290
    %v292 = vpop.xlane.xlu0 %291
    %v293 = vsel %vm157, %v249, 0.0
    %294 = vadd.xlane.f32.xlu0 %v293
    %v295 = vpop.xlane.xlu0 %294
    %v296 = vsel %vm157, %v251, 0.0
    %297 = vadd.xlane.f32.xlu0 %v296
    %v298 = vpop.xlane.xlu0 %297
    %v299 = vsel %vm157, %v253, 0.0
    %300 = vadd.xlane.f32.xlu0 %v299
    %v301 = vpop.xlane.xlu0 %300
    %v302 = vlog2.pop %v256
    %v303 = vmul.f32 %v302, 0.6931472
    %v304 = vlog2.pop %v259
    %v305 = vmul.f32 %v304, 0.6931472
    %v306 = vlog2.pop %v262
    %v307 = vmul.f32 %v306, 0.6931472
    %v308 = vlog2.pop %v265
    %v309 = vmul.f32 %v308, 0.6931472
    %v310 = vlog2.pop %v268
    %v311 = vmul.f32 %v310, 0.6931472
    %v312 = vlog2.pop %v271
    %v313 = vmul.f32 %v312, 0.6931472
    %v314 = vlog2.pop %v274
    %v315 = vmul.f32 %v314, 0.6931472
    %v316 = vlog2.pop %v277
    %v317 = vmul.f32 %v316, 0.6931472
    %v318 = vlog2.pop %v280
    %v319 = vmul.f32 %v318, 0.6931472
    %v320 = vlog2.pop %v283
    %v321 = vmul.f32 %v320, 0.6931472
    %v322 = vlog2.pop %v286
    %v323 = vmul.f32 %v322, 0.6931472
    %v324 = vlog2.pop %v289
    %v325 = vmul.f32 %v324, 0.6931472
    %v326 = vlog2.pop %v292
    %v327 = vmul.f32 %v326, 0.6931472
    %v328 = vlog2.pop %v295
    %v329 = vmul.f32 %v328, 0.6931472
    %v330 = vlog2.pop %v298
    %v331 = vmul.f32 %v330, 0.6931472
    %v332 = vlog2.pop %v301
    %v333 = vmul.f32 %v332, 0.6931472
    %v334 = vadd.f32 %v160, %v303
    %v335 = vadd.f32 %v163, %v305
    %v336 = vadd.f32 %v166, %v307
    %v337 = vadd.f32 %v169, %v309
    %v338 = vadd.f32 %v172, %v311
    %v339 = vadd.f32 %v175, %v313
    %v340 = vadd.f32 %v178, %v315
    %v341 = vadd.f32 %v181, %v317
    %v342 = vadd.f32 %v184, %v319
    %v343 = vadd.f32 %v187, %v321
    %v344 = vadd.f32 %v190, %v323
    %v345 = vadd.f32 %v193, %v325
    %v346 = vadd.f32 %v196, %v327
    %v347 = vadd.f32 %v199, %v329
    %v348 = vadd.f32 %v202, %v331
    %v349 = vadd.f32 %v205, %v333
    %v350 = vlaneseq
    %v351 = vand.u32 %v350, 127
    %352 = vset.pattern.permute.xlu0 0
    %353 = vperm.xlu0 %352, %v140
    %v354 = vpop.permute.xlu0 %353
    %355 = vset.pattern.permute.xlu0 0
    %356 = vperm.xlu0 %355, %v141
    %v357 = vpop.permute.xlu0 %356
    %358 = vset.pattern.permute.xlu0 0
    %359 = vperm.xlu0 %358, %v142
    %v360 = vpop.permute.xlu0 %359
    %361 = vset.pattern.permute.xlu0 0
    %362 = vperm.xlu0 %361, %v143
    %v363 = vpop.permute.xlu0 %362
    %364 = vset.pattern.permute.xlu0 0
    %365 = vperm.xlu0 %364, %v144
    %v366 = vpop.permute.xlu0 %365
    %367 = vset.pattern.permute.xlu0 0
    %368 = vperm.xlu0 %367, %v145
    %v369 = vpop.permute.xlu0 %368
    %370 = vset.pattern.permute.xlu0 0
    %371 = vperm.xlu0 %370, %v146
    %v372 = vpop.permute.xlu0 %371
    %373 = vset.pattern.permute.xlu0 0
    %374 = vperm.xlu0 %373, %v147
    %v375 = vpop.permute.xlu0 %374
    %376 = vset.pattern.permute.xlu0 0
    %377 = vperm.xlu0 %376, %v148
    %v378 = vpop.permute.xlu0 %377
    %379 = vset.pattern.permute.xlu0 0
    %380 = vperm.xlu0 %379, %v149
    %v381 = vpop.permute.xlu0 %380
    %382 = vset.pattern.permute.xlu0 0
    %383 = vperm.xlu0 %382, %v150
    %v384 = vpop.permute.xlu0 %383
    %385 = vset.pattern.permute.xlu0 0
    %386 = vperm.xlu0 %385, %v151
    %v387 = vpop.permute.xlu0 %386
    %388 = vset.pattern.permute.xlu0 0
    %389 = vperm.xlu0 %388, %v152
    %v390 = vpop.permute.xlu0 %389
    %391 = vset.pattern.permute.xlu0 0
    %392 = vperm.xlu0 %391, %v153
    %v393 = vpop.permute.xlu0 %392
    %394 = vset.pattern.permute.xlu0 0
    %395 = vperm.xlu0 %394, %v154
    %v396 = vpop.permute.xlu0 %395
    %397 = vset.pattern.permute.xlu0 0
    %398 = vperm.xlu0 %397, %v155
    %v399 = vpop.permute.xlu0 %398
    %vm400 = vcmp.eq.s32.totalorder %v351, %v354
    %vm401 = vcmp.eq.s32.totalorder %v351, %v357
    %vm402 = vcmp.eq.s32.totalorder %v351, %v360
    %vm403 = vcmp.eq.s32.totalorder %v351, %v363
    %vm404 = vcmp.eq.s32.totalorder %v351, %v366
    %vm405 = vcmp.eq.s32.totalorder %v351, %v369
    %vm406 = vcmp.eq.s32.totalorder %v351, %v372
    %vm407 = vcmp.eq.s32.totalorder %v351, %v375
    %vm408 = vcmp.eq.s32.totalorder %v351, %v378
    %vm409 = vcmp.eq.s32.totalorder %v351, %v381
    %vm410 = vcmp.eq.s32.totalorder %v351, %v384
    %vm411 = vcmp.eq.s32.totalorder %v351, %v387
    %vm412 = vcmp.eq.s32.totalorder %v351, %v390
    %vm413 = vcmp.eq.s32.totalorder %v351, %v393
    %vm414 = vcmp.eq.s32.totalorder %v351, %v396
    %vm415 = vcmp.eq.s32.totalorder %v351, %v399
    %v416 = vsel %vm400, %v124, 0.0
    %v417 = vsel %vm401, %v125, 0.0
    %v418 = vsel %vm402, %v126, 0.0
    %v419 = vsel %vm403, %v127, 0.0
    %v420 = vsel %vm404, %v128, 0.0
    %v421 = vsel %vm405, %v129, 0.0
    %v422 = vsel %vm406, %v130, 0.0
    %v423 = vsel %vm407, %v131, 0.0
    %v424 = vsel %vm408, %v132, 0.0
    %v425 = vsel %vm409, %v133, 0.0
    %v426 = vsel %vm410, %v134, 0.0
    %v427 = vsel %vm411, %v135, 0.0
    %v428 = vsel %vm412, %v136, 0.0
    %v429 = vsel %vm413, %v137, 0.0
    %v430 = vsel %vm414, %v138, 0.0
    %v431 = vsel %vm415, %v139, 0.0
    %v432 = vsel %vm157, %v416, 0.0
    %433 = vadd.xlane.f32.xlu0 %v432
    %v434 = vpop.xlane.xlu0 %433
    %v435 = vsel %vm157, %v417, 0.0
    %436 = vadd.xlane.f32.xlu0 %v435
    %v437 = vpop.xlane.xlu0 %436
    %v438 = vsel %vm157, %v418, 0.0
    %439 = vadd.xlane.f32.xlu0 %v438
    %v440 = vpop.xlane.xlu0 %439
    %v441 = vsel %vm157, %v419, 0.0
    %442 = vadd.xlane.f32.xlu0 %v441
    %v443 = vpop.xlane.xlu0 %442
    %v444 = vsel %vm157, %v420, 0.0
    %445 = vadd.xlane.f32.xlu0 %v444
    %v446 = vpop.xlane.xlu0 %445
    %v447 = vsel %vm157, %v421, 0.0
    %448 = vadd.xlane.f32.xlu0 %v447
    %v449 = vpop.xlane.xlu0 %448
    %v450 = vsel %vm157, %v422, 0.0
    %451 = vadd.xlane.f32.xlu0 %v450
    %v452 = vpop.xlane.xlu0 %451
    %v453 = vsel %vm157, %v423, 0.0
    %454 = vadd.xlane.f32.xlu0 %v453
    %v455 = vpop.xlane.xlu0 %454
    %v456 = vsel %vm157, %v424, 0.0
    %457 = vadd.xlane.f32.xlu0 %v456
    %v458 = vpop.xlane.xlu0 %457
    %v459 = vsel %vm157, %v425, 0.0
    %460 = vadd.xlane.f32.xlu0 %v459
    %v461 = vpop.xlane.xlu0 %460
    %v462 = vsel %vm157, %v426, 0.0
    %463 = vadd.xlane.f32.xlu0 %v462
    %v464 = vpop.xlane.xlu0 %463
    %v465 = vsel %vm157, %v427, 0.0
    %466 = vadd.xlane.f32.xlu0 %v465
    %v467 = vpop.xlane.xlu0 %466
    %v468 = vsel %vm157, %v428, 0.0
    %469 = vadd.xlane.f32.xlu0 %v468
    %v470 = vpop.xlane.xlu0 %469
    %v471 = vsel %vm157, %v429, 0.0
    %472 = vadd.xlane.f32.xlu0 %v471
    %v473 = vpop.xlane.xlu0 %472
    %v474 = vsel %vm157, %v430, 0.0
    %475 = vadd.xlane.f32.xlu0 %v474
    %v476 = vpop.xlane.xlu0 %475
    %v477 = vsel %vm157, %v431, 0.0
    %478 = vadd.xlane.f32.xlu0 %v477
    %v479 = vpop.xlane.xlu0 %478
    %v481 = vperm.slane %v156, 0
    %v483 = vsel %vm400, %v481, 0.0
    %v484 = vsel %vm401, %v481, 0.0
    %v485 = vsel %vm402, %v481, 0.0
    %v486 = vsel %vm403, %v481, 0.0
    %v487 = vsel %vm404, %v481, 0.0
    %v488 = vsel %vm405, %v481, 0.0
    %v489 = vsel %vm406, %v481, 0.0
    %v490 = vsel %vm407, %v481, 0.0
    %v491 = vsel %vm408, %v481, 0.0
    %v492 = vsel %vm409, %v481, 0.0
    %v493 = vsel %vm410, %v481, 0.0
    %v494 = vsel %vm411, %v481, 0.0
    %v495 = vsel %vm412, %v481, 0.0
    %v496 = vsel %vm413, %v481, 0.0
    %v497 = vsel %vm414, %v481, 0.0
    %v498 = vsel %vm415, %v481, 0.0
    %v499 = vsel %vm157, %v483, 0.0
    %500 = vadd.xlane.f32.xlu0 %v499
    %v501 = vpop.xlane.xlu0 %500
    %v502 = vsel %vm157, %v484, 0.0
    %503 = vadd.xlane.f32.xlu0 %v502
    %v504 = vpop.xlane.xlu0 %503
    %v505 = vsel %vm157, %v485, 0.0
    %506 = vadd.xlane.f32.xlu0 %v505
    %v507 = vpop.xlane.xlu0 %506
    %v508 = vsel %vm157, %v486, 0.0
    %509 = vadd.xlane.f32.xlu0 %v508
    %v510 = vpop.xlane.xlu0 %509
    %v511 = vsel %vm157, %v487, 0.0
    %512 = vadd.xlane.f32.xlu0 %v511
    %v513 = vpop.xlane.xlu0 %512
    %v514 = vsel %vm157, %v488, 0.0
    %515 = vadd.xlane.f32.xlu0 %v514
    %v516 = vpop.xlane.xlu0 %515
    %v517 = vsel %vm157, %v489, 0.0
    %518 = vadd.xlane.f32.xlu0 %v517
    %v519 = vpop.xlane.xlu0 %518
    %v520 = vsel %vm157, %v490, 0.0
    %521 = vadd.xlane.f32.xlu0 %v520
    %v522 = vpop.xlane.xlu0 %521
    %v523 = vsel %vm157, %v491, 0.0
    %524 = vadd.xlane.f32.xlu0 %v523
    %v525 = vpop.xlane.xlu0 %524
    %v526 = vsel %vm157, %v492, 0.0
    %527 = vadd.xlane.f32.xlu0 %v526
    %v528 = vpop.xlane.xlu0 %527
    %v529 = vsel %vm157, %v493, 0.0
    %530 = vadd.xlane.f32.xlu0 %v529
    %v531 = vpop.xlane.xlu0 %530
    %v532 = vsel %vm157, %v494, 0.0
    %533 = vadd.xlane.f32.xlu0 %v532
    %v534 = vpop.xlane.xlu0 %533
    %v535 = vsel %vm157, %v495, 0.0
    %536 = vadd.xlane.f32.xlu0 %v535
    %v537 = vpop.xlane.xlu0 %536
    %v538 = vsel %vm157, %v496, 0.0
    %539 = vadd.xlane.f32.xlu0 %v538
    %v540 = vpop.xlane.xlu0 %539
    %v541 = vsel %vm157, %v497, 0.0
    %542 = vadd.xlane.f32.xlu0 %v541
    %v543 = vpop.xlane.xlu0 %542
    %v544 = vsel %vm157, %v498, 0.0
    %545 = vadd.xlane.f32.xlu0 %v544
    %v546 = vpop.xlane.xlu0 %545
    %v547 = vsel %vm60, %v501, 0.0
    %v548 = vsel %vm61, %v504, 0.0
    %v549 = vsel %vm62, %v507, 0.0
    %v550 = vsel %vm63, %v510, 0.0
    %v551 = vsel %vm64, %v513, 0.0
    %v552 = vsel %vm65, %v516, 0.0
    %v553 = vsel %vm66, %v519, 0.0
    %v554 = vsel %vm67, %v522, 0.0
    %v555 = vsel %vm68, %v525, 0.0
    %v556 = vsel %vm69, %v528, 0.0
    %v557 = vsel %vm70, %v531, 0.0
    %v558 = vsel %vm71, %v534, 0.0
    %v559 = vsel %vm72, %v537, 0.0
    %v560 = vsel %vm73, %v540, 0.0
    %v561 = vsel %vm74, %v543, 0.0
    %v562 = vsel %vm75, %v546, 0.0
    %v563 = vsub.f32 %v434, %v334
    %v564 = vsub.f32 %v437, %v335
    %v565 = vsub.f32 %v440, %v336
    %v566 = vsub.f32 %v443, %v337
    %v567 = vsub.f32 %v446, %v338
    %v568 = vsub.f32 %v449, %v339
    %v569 = vsub.f32 %v452, %v340
    %v570 = vsub.f32 %v455, %v341
    %v571 = vsub.f32 %v458, %v342
    %v572 = vsub.f32 %v461, %v343
    %v573 = vsub.f32 %v464, %v344
    %v574 = vsub.f32 %v467, %v345
    %v575 = vsub.f32 %v470, %v346
    %v576 = vsub.f32 %v473, %v347
    %v577 = vsub.f32 %v476, %v348
    %v578 = vsub.f32 %v479, %v349
    %v579 = vmul.f32 %v563, 1.442695
    %v580 = vpow.pop %v579
    %v581 = vmul.f32 %v564, 1.442695
    %v582 = vpow.pop %v581
    %v583 = vmul.f32 %v565, 1.442695
    %v584 = vpow.pop %v583
    %v585 = vmul.f32 %v566, 1.442695
    %v586 = vpow.pop %v585
    %v587 = vmul.f32 %v567, 1.442695
    %v588 = vpow.pop %v587
    %v589 = vmul.f32 %v568, 1.442695
    %v590 = vpow.pop %v589
    %v591 = vmul.f32 %v569, 1.442695
    %v592 = vpow.pop %v591
    %v593 = vmul.f32 %v570, 1.442695
    %v594 = vpow.pop %v593
    %v595 = vmul.f32 %v571, 1.442695
    %v596 = vpow.pop %v595
    %v597 = vmul.f32 %v572, 1.442695
    %v598 = vpow.pop %v597
    %v599 = vmul.f32 %v573, 1.442695
    %v600 = vpow.pop %v599
    %v601 = vmul.f32 %v574, 1.442695
    %v602 = vpow.pop %v601
    %v603 = vmul.f32 %v575, 1.442695
    %v604 = vpow.pop %v603
    %v605 = vmul.f32 %v576, 1.442695
    %v606 = vpow.pop %v605
    %v607 = vmul.f32 %v577, 1.442695
    %v608 = vpow.pop %v607
    %v609 = vmul.f32 %v578, 1.442695
    %v610 = vpow.pop %v609
    %v611 = vsub.f32 1.0, %v580
    %v612 = vsub.f32 1.0, %v582
    %v613 = vsub.f32 1.0, %v584
    %v614 = vsub.f32 1.0, %v586
    %v615 = vsub.f32 1.0, %v588
    %v616 = vsub.f32 1.0, %v590
    %v617 = vsub.f32 1.0, %v592
    %v618 = vsub.f32 1.0, %v594
    %v619 = vsub.f32 1.0, %v596
    %v620 = vsub.f32 1.0, %v598
    %v621 = vsub.f32 1.0, %v600
    %v622 = vsub.f32 1.0, %v602
    %v623 = vsub.f32 1.0, %v604
    %v624 = vsub.f32 1.0, %v606
    %v625 = vsub.f32 1.0, %v608
    %v626 = vsub.f32 1.0, %v610
    %v627 = vmax.f32 %v611, 0.0
    %v628 = vmax.f32 %v612, 0.0
    %v629 = vmax.f32 %v613, 0.0
    %v630 = vmax.f32 %v614, 0.0
    %v631 = vmax.f32 %v615, 0.0
    %v632 = vmax.f32 %v616, 0.0
    %v633 = vmax.f32 %v617, 0.0
    %v634 = vmax.f32 %v618, 0.0
    %v635 = vmax.f32 %v619, 0.0
    %v636 = vmax.f32 %v620, 0.0
    %v637 = vmax.f32 %v621, 0.0
    %v638 = vmax.f32 %v622, 0.0
    %v639 = vmax.f32 %v623, 0.0
    %v640 = vmax.f32 %v624, 0.0
    %v641 = vmax.f32 %v625, 0.0
    %v642 = vmax.f32 %v626, 0.0
    %v643 = vmul.f32 %v627, %v627
    %v644 = vmul.f32 %v628, %v628
    %v645 = vmul.f32 %v629, %v629
    %v646 = vmul.f32 %v630, %v630
    %v647 = vmul.f32 %v631, %v631
    %v648 = vmul.f32 %v632, %v632
    %v649 = vmul.f32 %v633, %v633
    %v650 = vmul.f32 %v634, %v634
    %v651 = vmul.f32 %v635, %v635
    %v652 = vmul.f32 %v636, %v636
    %v653 = vmul.f32 %v637, %v637
    %v654 = vmul.f32 %v638, %v638
    %v655 = vmul.f32 %v639, %v639
    %v656 = vmul.f32 %v640, %v640
    %v657 = vmul.f32 %v641, %v641
    %v658 = vmul.f32 %v642, %v642
    %v659 = vmul.f32 %v643, %v563
    %v660 = vmul.f32 %v644, %v564
    %v661 = vmul.f32 %v645, %v565
    %v662 = vmul.f32 %v646, %v566
    %v663 = vmul.f32 %v647, %v567
    %v664 = vmul.f32 %v648, %v568
    %v665 = vmul.f32 %v649, %v569
    %v666 = vmul.f32 %v650, %v570
    %v667 = vmul.f32 %v651, %v571
    %v668 = vmul.f32 %v652, %v572
    %v669 = vmul.f32 %v653, %v573
    %v670 = vmul.f32 %v654, %v574
    %v671 = vmul.f32 %v655, %v575
    %v672 = vmul.f32 %v656, %v576
    %v673 = vmul.f32 %v657, %v577
    %v674 = vmul.f32 %v658, %v578
    %v675 = vld [vmem:[#allocation2] sm:$0x1]
    %v676 = vsub.f32 0.0, %v547
    %v677 = vsub.f32 0.0, %v548
    %v678 = vsub.f32 0.0, %v549
    %v679 = vsub.f32 0.0, %v550
    %v680 = vsub.f32 0.0, %v551
    %v681 = vsub.f32 0.0, %v552
    %v682 = vsub.f32 0.0, %v553
    %v683 = vsub.f32 0.0, %v554
    %v684 = vsub.f32 0.0, %v555
    %v685 = vsub.f32 0.0, %v556
    %v686 = vsub.f32 0.0, %v557
    %v687 = vsub.f32 0.0, %v558
    %v688 = vsub.f32 0.0, %v559
    %v689 = vsub.f32 0.0, %v560
    %v690 = vsub.f32 0.0, %v561
    %v691 = vsub.f32 0.0, %v562
    %v692 = vmul.f32 %v676, %v659
    %v693 = vmul.f32 %v677, %v660
    %v694 = vmul.f32 %v678, %v661
    %v695 = vmul.f32 %v679, %v662
    %v696 = vmul.f32 %v680, %v663
    %v697 = vmul.f32 %v681, %v664
    %v698 = vmul.f32 %v682, %v665
    %v699 = vmul.f32 %v683, %v666
    %v700 = vmul.f32 %v684, %v667
    %v701 = vmul.f32 %v685, %v668
    %v702 = vmul.f32 %v686, %v669
    %v703 = vmul.f32 %v687, %v670
    %v704 = vmul.f32 %v688, %v671
    %v705 = vmul.f32 %v689, %v672
    %v706 = vmul.f32 %v690, %v673
    %v707 = vmul.f32 %v691, %v674
    %vm708 = vcmask 7168
    %v709 = vsel %vm708, %v692, 0.0
    %v710 = vsel %vm708, %v693, 0.0
    %v711 = vadd.f32 %v709, %v710
    %v712 = vsel %vm708, %v694, 0.0
    %v713 = vadd.f32 %v711, %v712
    %v714 = vsel %vm708, %v695, 0.0
    %v715 = vadd.f32 %v713, %v714
    %v716 = vsel %vm708, %v696, 0.0
    %v717 = vadd.f32 %v715, %v716
    %v718 = vsel %vm708, %v697, 0.0
    %v719 = vadd.f32 %v717, %v718
    %v720 = vsel %vm708, %v698, 0.0
    %v721 = vadd.f32 %v719, %v720
    %v722 = vsel %vm708, %v699, 0.0
    %v723 = vadd.f32 %v721, %v722
    %v724 = vsel %vm708, %v700, 0.0
    %v725 = vadd.f32 %v723, %v724
    %v726 = vsel %vm708, %v701, 0.0
    %v727 = vadd.f32 %v725, %v726
    %v728 = vsel %vm708, %v702, 0.0
    %v729 = vadd.f32 %v727, %v728
    %v730 = vsel %vm708, %v703, 0.0
    %v731 = vadd.f32 %v729, %v730
    %v732 = vsel %vm708, %v704, 0.0
    %v733 = vadd.f32 %v731, %v732
    %v734 = vsel %vm708, %v705, 0.0
    %v735 = vadd.f32 %v733, %v734
    %v736 = vsel %vm708, %v706, 0.0
    %v737 = vadd.f32 %v735, %v736
    %v738 = vsel %vm708, %v707, 0.0
    %v739 = vadd.f32 %v737, %v738
    %740 = vadd.xlane.f32.xlu0 %v739
    %v741 = vpop.xlane.xlu0 %740
    %v742 = vrot.slane %v741, 4
    %v743 = vadd.f32 %v741, %v742
    %v744 = vrot.slane %v743, 2
    %v745 = vadd.f32 %v743, %v744
    %v746 = vrot.slane %v745, 1
    %v747 = vadd.f32 %v745, %v746
    %s748 = vtos %v747
    %v749 = vstv %s748
    %v750 = vadd.f32 %v675, %v749
    %vm751 = vcmask 0
    %752 = vst.msk [vmem:[#allocation2] sm:$0x1] %vm751, %v750
    %v753 = vld [vmem:[#allocation4] sm:$0x1]
    %v754 = vsel %vm708, %v547, 0.0
    %v755 = vsel %vm708, %v548, 0.0
    %v756 = vadd.f32 %v754, %v755
    %v757 = vsel %vm708, %v549, 0.0
    %v758 = vadd.f32 %v756, %v757
    %v759 = vsel %vm708, %v550, 0.0
    %v760 = vadd.f32 %v758, %v759
    %v761 = vsel %vm708, %v551, 0.0
    %v762 = vadd.f32 %v760, %v761
    %v763 = vsel %vm708, %v552, 0.0
    %v764 = vadd.f32 %v762, %v763
    %v765 = vsel %vm708, %v553, 0.0
    %v766 = vadd.f32 %v764, %v765
    %v767 = vsel %vm708, %v554, 0.0
    %v768 = vadd.f32 %v766, %v767
    %v769 = vsel %vm708, %v555, 0.0
    %v770 = vadd.f32 %v768, %v769
    %v771 = vsel %vm708, %v556, 0.0
    %v772 = vadd.f32 %v770, %v771
    %v773 = vsel %vm708, %v557, 0.0
    %v774 = vadd.f32 %v772, %v773
    %v775 = vsel %vm708, %v558, 0.0
    %v776 = vadd.f32 %v774, %v775
    %v777 = vsel %vm708, %v559, 0.0
    %v778 = vadd.f32 %v776, %v777
    %v779 = vsel %vm708, %v560, 0.0
    %v780 = vadd.f32 %v778, %v779
    %v781 = vsel %vm708, %v561, 0.0
    %v782 = vadd.f32 %v780, %v781
    %v783 = vsel %vm708, %v562, 0.0
    %v784 = vadd.f32 %v782, %v783
    %785 = vadd.xlane.f32.xlu0 %v784
    %v786 = vpop.xlane.xlu0 %785
    %v787 = vrot.slane %v786, 4
    %v788 = vadd.f32 %v786, %v787
    %v789 = vrot.slane %v788, 2
    %v790 = vadd.f32 %v788, %v789
    %v791 = vrot.slane %v790, 1
    %v792 = vadd.f32 %v790, %v791
    %s793 = vtos %v792
    %v794 = vstv %s793
    %v795 = vadd.f32 %v753, %v794
    %796 = vst.msk [vmem:[#allocation4] sm:$0x1] %vm751, %v795
    // Predicated region
    $region18: #{tpu_custom_call.1} parent=1 // pred_check
      _
    $region19: #{tpu_custom_call.1} parent=1 // pred_check_branch
      %798 = sbr.rel (0) target = $region21
    $region20: #{tpu_custom_call.1} parent=1 // pred_region
      %800 = vsyncadd [#allocation3], 0
      %s802 = sshll.u32 [#allocation2], 4
      %s803 = int_to_ptr.vmem [resolvable:$true] %s802
      %s804 = sshll.u32 %s3, 4
      %s805 = int_to_ptr.hbm [resolvable:$true] %s804
      %807 = dma.vmem_to_hbm [thread:$0]  %s803, 16, %s805, [#allocation3]
    $region21: #{tpu_custom_call.1} parent=1 // pred_fallthru
      _
    // Predicated region
    $region22: #{tpu_custom_call.1} parent=1 // pred_check
      _
    $region23: #{tpu_custom_call.1} parent=1 // pred_check_branch
      %809 = sbr.rel (0) target = $region25
    $region24: #{tpu_custom_call.1} parent=1 // pred_region
      %811 = vsyncadd [#allocation5], 0
      %s813 = sshll.u32 [#allocation4], 4
      %s814 = int_to_ptr.vmem [resolvable:$true] %s813
      %s815 = sshll.u32 %s4, 4
      %s816 = int_to_ptr.hbm [resolvable:$true] %s815
      %818 = dma.vmem_to_hbm [thread:$0]  %s814, 16, %s816, [#allocation5]
    $region25: #{tpu_custom_call.1} parent=1 // pred_fallthru
      _
    // Predicated region
    $region26: #{tpu_custom_call.1} parent=1 // pred_check
      _
    $region27: #{tpu_custom_call.1} parent=1 // pred_check_branch
      %820 = sbr.rel (0) target = $region29
    $region28: #{tpu_custom_call.1} parent=1 // pred_region
      %822 = dma.done [#allocation3], 16
    $region29: #{tpu_custom_call.1} parent=1 // pred_fallthru
      _
    // Predicated region
    $region30: #{tpu_custom_call.1} parent=1 // pred_check
      _
    $region31: #{tpu_custom_call.1} parent=1 // pred_check_branch
      %824 = sbr.rel (0) target = $region33
    $region32: #{tpu_custom_call.1} parent=1 // pred_region
      %826 = dma.done [#allocation5], 16
    $region33: #{tpu_custom_call.1} parent=1 // pred_fallthru
      _
    %827 = vsyncpa [#allocation3], 1
    %828 = vsyncpa [#allocation5], 1

</llo_original>
